<compile_context>
chip_gen: v7x
topology: tpu7x:2x2x1
jax: 0.10.0
libtpu: 0.0.40
codegen_flags: <defaults>
</compile_context>

<pallas_src>
import functools
import math

import numpy as np
import jax
import jax.numpy as jnp
from jax.experimental import pallas as pl
from jax.experimental.pallas import tpu as pltpu


def _round_up(a, b):
    return ((a + b - 1) // b) * b


def _cdiv(a, b):
    return (a + b - 1) // b


@functools.lru_cache(maxsize=None)
def _sinc_resample_kernel(factor, lowpass_filter_width=6, rolloff=0.99):
    """Replicates torchaudio Resample(orig_freq=factor, new_freq=1) default
    ("sinc_interp_hann") filter taps.  Returns (taps[K], width), K = 2*width + factor."""
    orig_freq = int(factor)
    base_freq = 1.0 * rolloff                      # min(orig, new) * rolloff, new == 1
    width = int(math.ceil(lowpass_filter_width * orig_freq / base_freq))
    idx = np.arange(-width, width + orig_freq, dtype=np.float64) / orig_freq
    t = np.clip(idx * base_freq, -lowpass_filter_width, lowpass_filter_width)
    window = np.cos(t * math.pi / lowpass_filter_width / 2.0) ** 2
    t = t * math.pi
    sinc = np.ones_like(t)
    nz = t != 0.0
    sinc[nz] = np.sin(t[nz]) / t[nz]
    taps = (sinc * window * (base_freq / orig_freq)).astype(np.float32)
    return taps, width


@functools.lru_cache(maxsize=None)
def _band_matrix(factor, tn, kband, dtype_name):
    """Constant (Kband, tn) band matrix, identical for every output column tile:
    W[r, c] = taps[r - c*factor] if 0 <= r - c*factor < K else 0."""
    taps, _ = _sinc_resample_kernel(factor)
    K = taps.shape[0]
    t = np.arange(kband)[:, None] - np.arange(tn)[None, :] * factor
    w = np.where((t >= 0) & (t < K), taps[np.clip(t, 0, K - 1)], 0.0).astype(np.float32)
    return jnp.asarray(w, dtype=dtype_name)


# ----------------------------- Pallas kernels -----------------------------

def _banded_matmul_acc_kernel(tk, x_ref, w_ref, o_ref, acc_ref):
    # x_ref: (tm, tk) block of the x band.  w_ref: full resident (Kband, tn) band
    # matrix (constant block index -> DMA'd once).  Slice the matching tk rows.
    k = pl.program_id(2)

    @pl.when(k == 0)
    def _():
        acc_ref[...] = jnp.zeros_like(acc_ref)

    off = pl.multiple_of(k * tk, 128)
    acc_ref[...] += jnp.dot(x_ref[...], w_ref[pl.ds(off, tk), :],
                            preferred_element_type=jnp.float32)

    @pl.when(k == pl.num_programs(2) - 1)
    def _():
        o_ref[...] = acc_ref[...].astype(o_ref.dtype)


def _banded_matmul_single_kernel(x_ref, w_ref, o_ref):
    # Whole band fits one k block: no accumulator scratch, write the dot directly.
    o_ref[...] = jnp.dot(x_ref[...], w_ref[...],
                         preferred_element_type=jnp.float32).astype(o_ref.dtype)


# ----------------------------- tiling / wrapper -----------------------------

def _vmem_budget_bytes():
    """(working-set target, vmem_limit_bytes) derived from the device, with fallbacks."""
    phys = 64 << 20
    try:
        info = pltpu.get_tpu_info()
        phys = int(getattr(info, "vmem_capacity_bytes", phys))
    except Exception:
        pass
    budget = min(phys // 4, 32 << 20)   # conservative target for the tile working set
    limit = min(phys // 2, 64 << 20)    # scoped-VMEM limit handed to Mosaic
    return budget, limit


def _choose_tiles(M, Lout, factor, K, x_bytes, w_bytes, out_bytes, budget):
    """Pick (tm, tn, tk, nbk, kband, n_j) so the double-buffered working set fits."""
    sub = 16 if x_bytes == 2 else 8
    tm = min(256, _round_up(M, sub))          # M is usually small (B*C); no waste
    choice = None
    for tn_cap in (1024, 512, 256, 128):
        tn = min(tn_cap, _round_up(Lout, 128))
        n_j = _cdiv(Lout, tn)
        band_len = (tn - 1) * factor + K      # rows of x_ext touched by one column tile
        if n_j == 1:
            # Single column tile: band start is always 0 -> one (possibly unaligned)
            # k block covering the whole band; no accumulator needed.
            tk = _round_up(band_len, 128)
        else:
            # Band starts at j*tn*factor; blocked indexing requires tk | tn*factor.
            span = tn * factor
            cap = min(2048, span)
            cands = [t for t in range(128, cap + 1, 128) if span % t == 0]
            pref = [t for t in cands if t >= min(512, span)] or cands
            # Minimize the padded band (nbk*tk); tie-break on larger tk (fewer steps).
            tk = min(pref, key=lambda t: (_cdiv(band_len, t) * t, -t))
        nbk = _cdiv(band_len, tk)
        kband = nbk * tk
        usage = (2 * tm * tk * x_bytes        # x band blocks, double-buffered
                 + 2 * kband * tn * w_bytes   # resident W_band (allocation is 2x)
                 + 2 * tm * tn * out_bytes    # output blocks, double-buffered
                 + tm * tn * 4)               # f32 accumulator scratch
        choice = (tm, tn, tk, nbk, kband, n_j, usage)
        if usage <= budget:
            break
    return choice


def circular_downsample_aa(x, factor, *, compute_dtype=jnp.bfloat16):
    """Pallas TPU implementation of CircularDownSampleAA.forward (NCL layout).

    compute_dtype: dtype of the MXU operands (filter + staged input).  Accumulation is
    always float32 and the output dtype matches x.dtype.  Default bf16 (fast); pass
    jnp.float32 (or None) for tight numerics.
    """
    assert isinstance(factor, int) and factor >= 1
    B, C, L = x.shape
    assert L % factor == 0
    assert L > 16 * factor            # same constraint the PyTorch module's pad implies
    Lout = L // factor

    taps, width = _sinc_resample_kernel(factor)
    K = int(taps.shape[0])            # == 2*width + factor
    M = B * C
    cdt = jnp.dtype(x.dtype if compute_dtype is None else compute_dtype)
    out_bytes = jnp.dtype(x.dtype).itemsize

    budget, vmem_limit = _vmem_budget_bytes()
    tm, tn, tk, nbk, kband, n_j, _usage = _choose_tiles(
        M, Lout, factor, K, cdt.itemsize, cdt.itemsize, out_bytes, budget)
    # Note: on dual-TensorCore chips (v7x) a (1, 1) parallel grid idles one core;
    # shapes that small are latency-trivial anyway, so we don't force a split here.

    Mp = _round_up(M, tm)
    Np = n_j * tn
    Kp = (n_j - 1) * tn * factor + kband      # covers the last tile's padded band
    Lext = L + 2 * width                      # circularly extended length (never wraps)

    # x_ext[r] = x[(r - width) mod L]  =>  out[n] = sum_t taps[t] * x_ext[n*factor + t]
    x2d = x.reshape(M, L)
    xe = jnp.concatenate([x2d[:, L - width:], x2d, x2d[:, :width]], axis=1).astype(cdt)
    xe = jnp.pad(xe, ((0, Mp - M), (0, Kp - Lext)))

    w_band = _band_matrix(factor, tn, kband, cdt.name)   # cached constant, never padded at runtime

    if nbk == 1:
        grid = (Mp // tm, n_j)                # n_j == 1 on this path
        grid_spec = pltpu.PrefetchScalarGridSpec(
            num_scalar_prefetch=0, grid=grid,
            in_specs=[pl.BlockSpec((tm, tk), lambda i, j: (i, 0)),
                      pl.BlockSpec((kband, tn), lambda i, j: (0, 0))],
            out_specs=pl.BlockSpec((tm, tn), lambda i, j: (i, j)),
            scratch_shapes=[],
        )
        kernel = _banded_matmul_single_kernel
        dims = ("parallel", "parallel")
    else:
        kx_step = (tn * factor) // tk         # exact: tk | tn*factor by construction
        grid = (Mp // tm, n_j, nbk)
        grid_spec = pltpu.PrefetchScalarGridSpec(
            num_scalar_prefetch=0, grid=grid,
            in_specs=[pl.BlockSpec((tm, tk), lambda i, j, k: (i, j * kx_step + k)),
                      pl.BlockSpec((kband, tn), lambda i, j, k: (0, 0))],
            out_specs=pl.BlockSpec((tm, tn), lambda i, j, k: (i, j)),
            scratch_shapes=[pltpu.VMEM((tm, tn), jnp.float32)],
        )
        kernel = functools.partial(_banded_matmul_acc_kernel, tk)
        dims = ("parallel", "parallel", "arbitrary")

    out = pl.pallas_call(
        kernel,
        out_shape=jax.ShapeDtypeStruct((Mp, Np), x.dtype),
        grid_spec=grid_spec,
        compiler_params=pltpu.CompilerParams(
            dimension_semantics=dims, vmem_limit_bytes=int(vmem_limit)),
    )(xe, w_band)

    return out[:M, :Lout].reshape(B, C, Lout)


if __name__ == "__main__":
    def reference(x, factor):
        # Pure-JAX circular polyphase reference (same math as the torch module).
        taps, width = _sinc_resample_kernel(factor)
        L = x.shape[-1]
        K = taps.shape[0]
        idx = (np.arange(L // factor)[:, None] * factor
               + np.arange(K)[None, :] - width) % L
        return jnp.einsum("bcnk,k->bcn", x[:, :, idx], jnp.asarray(taps))

    # Case 1: small shape (single column tile / no-accumulator path).
    B, C, L, factor = 2, 4, 64, 2
    x = jax.random.normal(jax.random.PRNGKey(0), (B, C, L), dtype=jnp.float32)
    ref = reference(x, factor)

    y32 = jax.block_until_ready(
        circular_downsample_aa(x, factor, compute_dtype=jnp.float32))
    assert y32.shape == (B, C, L // factor) and y32.dtype == x.dtype
    assert jnp.allclose(y32, ref, rtol=1e-3, atol=1e-4), \
        float(jnp.max(jnp.abs(y32 - ref)))

    ybf = jax.block_until_ready(circular_downsample_aa(x, factor))   # default bf16 operands
    assert ybf.shape == (B, C, L // factor) and ybf.dtype == x.dtype
    assert jnp.allclose(ybf, ref, rtol=2e-2, atol=2e-2), \
        float(jnp.max(jnp.abs(ybf - ref)))

    # Case 2: longer signal -> multiple column tiles + banded k-reduction path.
    B2, C2, L2, factor2 = 2, 4, 4096, 2
    x2 = jax.random.normal(jax.random.PRNGKey(1), (B2, C2, L2), dtype=jnp.float32)
    ref2 = reference(x2, factor2)
    y2 = jax.block_until_ready(circular_downsample_aa(x2, factor2))
    assert y2.shape == (B2, C2, L2 // factor2) and y2.dtype == x2.dtype
    assert jnp.allclose(y2, ref2, rtol=2e-2, atol=2e-2), \
        float(jnp.max(jnp.abs(y2 - ref2)))

    print("KERNEL_OK")
</pallas_src>

<mosaic_0001>
module attributes {stable_mosaic.version = 11 : i64} {
  func.func @_banded_matmul_single_kernel(%arg0: i32, %arg1: i32, %arg2: memref<8x384xf32, #tpu.memory_space<vmem>>, %arg3: memref<384x128xf32, #tpu.memory_space<vmem>>, %arg4: memref<8x128xf32, #tpu.memory_space<vmem>>) attributes {dimension_semantics = [#tpu.dimension_semantics<parallel>, #tpu.dimension_semantics<parallel>], iteration_bounds = array<i64: 1, 1>, scalar_prefetch = 0 : i64, scratch_operands = 0 : i64, tpu.core_type = #tpu.core_type<tc>, window_params = [{transform_indices = @transform_0, window_bounds = array<i64: 8, 384>}, {pipeline_mode = #tpu.pipeline_mode<synchronous>, transform_indices = @transform_1, window_bounds = array<i64: 384, 128>}, {transform_indices = @transform_2, window_bounds = array<i64: 8, 128>}]} {
    %c0 = arith.constant 0 : index
    %c0_0 = arith.constant 0 : index
    %0 = vector.load %arg2[%c0, %c0_0] : memref<8x384xf32, #tpu.memory_space<vmem>>, vector<8x384xf32>
    %c0_1 = arith.constant 0 : index
    %c0_2 = arith.constant 0 : index
    %1 = vector.load %arg3[%c0_1, %c0_2] : memref<384x128xf32, #tpu.memory_space<vmem>>, vector<384x128xf32>
    %cst = arith.constant dense<0.000000e+00> : vector<8x128xf32>
    %2 = tpu.matmul %0, %1, %cst {dimension_numbers = #tpu.dot_dimension_numbers<[1], [0], [0], [1], [0, 0, 1, 1], [], []>} : vector<8x384xf32>, vector<384x128xf32>, vector<8x128xf32> -> vector<8x128xf32>
    %c0_3 = arith.constant 0 : index
    %c0_4 = arith.constant 0 : index
    %3 = vector.load %arg4[%c0_3, %c0_4] : memref<8x128xf32, #tpu.memory_space<vmem>>, vector<8x128xf32>
    tpu.vector_store %arg4[%c0_3, %c0_4], %2 {strides = array<i32>} : memref<8x128xf32, #tpu.memory_space<vmem>>, vector<8x128xf32>,
    return
  }
  func.func @transform_0(%arg0: i32, %arg1: i32) -> (i32, i32) {
    %c0_i32 = arith.constant 0 : i32
    %c0_i32_0 = arith.constant 0 : i32
    return %arg0, %c0_i32 : i32, i32
  }
  func.func @transform_1(%arg0: i32, %arg1: i32) -> (i32, i32) {
    %c0_i32 = arith.constant 0 : i32
    %c0_i32_0 = arith.constant 0 : i32
    %c0_i32_1 = arith.constant 0 : i32
    return %c0_i32, %c0_i32_0 : i32, i32
  }
  func.func @transform_2(%arg0: i32, %arg1: i32) -> (i32, i32) {
    %c0_i32 = arith.constant 0 : i32
    return %arg0, %arg1 : i32, i32
  }
}

</mosaic_0001>

<llo_original>
// kernel: tpu_custom_call.1
$region0: #{tpu_custom_call.1}
  #allocation0 [shape = 'u32[]', space=smem, size = 0x4, offset = 0x4, fixed_abs, tag = 'smem constant byte address 0x4 - core index']
  #allocation1 [shape = 'u32[144,128]{1,0:T(1,128)}', space=vmem, size = 0x12000, scoped, tag = 'internal scratch']
  %s0 = inlined_call_operand.hbm [shape: f32[8,384], index: 0, kind: input, shape index: {}]
  %s1 = inlined_call_operand.hbm [shape: f32[384,128], index: 1, kind: input, shape index: {}]
  %s2 = inlined_call_operand.hbm [shape: f32[8,128], index: 2, kind: output, shape index: {}]
  %s3 = sld [smem:[#allocation0]]
  $region26: #{tpu_custom_call.1} parent=0
    _
  %s5 = ssub.s32 1, %s3
  %s6 = scalar_select 0, %s5, %s3
  $region1: #{tpu_custom_call.1} parent=0
    #allocation2 [shape = 'u8[12288]{0}', space=vmem, size = 0x3000, scoped, tag = 'input window, operand 0, single buffered']
    #allocation3 [shape = 's32[1]{0}', space=sflag, size = 0x4, scoped, tag = 'scoped memory for tpu_custom_call.1']
    #allocation4 [shape = 's32[1]{0}', space=sflag, size = 0x4, scoped, tag = 'scoped memory for tpu_custom_call.1']
    #allocation5 [shape = 'u8[196608]{0}', space=vmem, size = 0x30000, scoped, tag = 'input window, operand 1, single buffered']
    #allocation6 [shape = 's32[1]{0}', space=sflag, size = 0x4, scoped, tag = 'scoped memory for tpu_custom_call.1']
    #allocation7 [shape = 'u8[4096]{0}', space=vmem, size = 0x1000, scoped, tag = 'output window, operand 0, single buffered']
    %7 = vsyncpa [#allocation3], 0
    %8 = vsyncpa [#allocation6], 0
    %9 = vsyncpa [#allocation4], 0
    // Predicated region
    $region2: #{tpu_custom_call.1} parent=1 // pred_check
      _
    $region3: #{tpu_custom_call.1} parent=1 // pred_check_branch
      %11 = sbr.rel (0) target = $region5
    $region4: #{tpu_custom_call.1} parent=1 // pred_region
      %s13 = ssub.s32 384, 384
      %14 = vsyncadd [#allocation3], %s13
      %s16 = sshll.u32 [#allocation2], 4
      %s17 = int_to_ptr.vmem [resolvable:$true] %s16
      %19 = dma.hbm_to_vmem [thread:$0]  %s0, 384, %s17, [#allocation3]
    $region5: #{tpu_custom_call.1} parent=1 // pred_fallthru
      _
    // Predicated region
    $region6: #{tpu_custom_call.1} parent=1 // pred_check
      _
    $region7: #{tpu_custom_call.1} parent=1 // pred_check_branch
      %21 = sbr.rel (0) target = $region9
    $region8: #{tpu_custom_call.1} parent=1 // pred_region
      %s23 = ssub.s32 6144, 6144
      %24 = vsyncadd [#allocation6], %s23
      %s25 = sshll.u32 [#allocation5], 4
      %s26 = int_to_ptr.vmem [resolvable:$true] %s25
      %31 = dma.hbm_to_vmem [thread:$0]  %s1, 6144, %s26, [#allocation6], 128, 128, 8
    $region9: #{tpu_custom_call.1} parent=1 // pred_fallthru
      _
    // Predicated region
    $region10: #{tpu_custom_call.1} parent=1 // pred_check
      _
    $region11: #{tpu_custom_call.1} parent=1 // pred_check_branch
      %33 = sbr.rel (0) target = $region13
    $region12: #{tpu_custom_call.1} parent=1 // pred_region
      %34 = dma.done [#allocation3], 384
    $region13: #{tpu_custom_call.1} parent=1 // pred_fallthru
      _
    // Predicated region
    $region14: #{tpu_custom_call.1} parent=1 // pred_check
      _
    $region15: #{tpu_custom_call.1} parent=1 // pred_check_branch
      %36 = sbr.rel (0) target = $region17
    $region16: #{tpu_custom_call.1} parent=1 // pred_region
      %37 = dma.done [#allocation6], 6144
    $region17: #{tpu_custom_call.1} parent=1 // pred_fallthru
      _
    %v38 = vld [vmem:[#allocation2] sm:$0xff]
    %v39 = vld [vmem:[#allocation2 + $0x8] sm:$0xff]
    %v40 = vld [vmem:[#allocation2 + $0x10] sm:$0xff]
    %v41 = vld [vmem:[#allocation5] sm:$0xff]
    %v42 = vld [vmem:[#allocation5 + $0x8] sm:$0xff]
    %v43 = vld [vmem:[#allocation5 + $0x10] sm:$0xff]
    %v44 = vld [vmem:[#allocation5 + $0x18] sm:$0xff]
    %v45 = vld [vmem:[#allocation5 + $0x20] sm:$0xff]
    %v46 = vld [vmem:[#allocation5 + $0x28] sm:$0xff]
    %v47 = vld [vmem:[#allocation5 + $0x30] sm:$0xff]
    %v48 = vld [vmem:[#allocation5 + $0x38] sm:$0xff]
    %v49 = vld [vmem:[#allocation5 + $0x40] sm:$0xff]
    %v50 = vld [vmem:[#allocation5 + $0x48] sm:$0xff]
    %v51 = vld [vmem:[#allocation5 + $0x50] sm:$0xff]
    %v52 = vld [vmem:[#allocation5 + $0x58] sm:$0xff]
    %v53 = vld [vmem:[#allocation5 + $0x60] sm:$0xff]
    %v54 = vld [vmem:[#allocation5 + $0x68] sm:$0xff]
    %v55 = vld [vmem:[#allocation5 + $0x70] sm:$0xff]
    %v56 = vld [vmem:[#allocation5 + $0x78] sm:$0xff]
    %v57 = vld [vmem:[#allocation5 + $0x80] sm:$0xff]
    %v58 = vld [vmem:[#allocation5 + $0x88] sm:$0xff]
    %v59 = vld [vmem:[#allocation5 + $0x90] sm:$0xff]
    %v60 = vld [vmem:[#allocation5 + $0x98] sm:$0xff]
    %v61 = vld [vmem:[#allocation5 + $0xa0] sm:$0xff]
    %v62 = vld [vmem:[#allocation5 + $0xa8] sm:$0xff]
    %v63 = vld [vmem:[#allocation5 + $0xb0] sm:$0xff]
    %v64 = vld [vmem:[#allocation5 + $0xb8] sm:$0xff]
    %v65 = vld [vmem:[#allocation5 + $0xc0] sm:$0xff]
    %v66 = vld [vmem:[#allocation5 + $0xc8] sm:$0xff]
    %v67 = vld [vmem:[#allocation5 + $0xd0] sm:$0xff]
    %v68 = vld [vmem:[#allocation5 + $0xd8] sm:$0xff]
    %v69 = vld [vmem:[#allocation5 + $0xe0] sm:$0xff]
    %v70 = vld [vmem:[#allocation5 + $0xe8] sm:$0xff]
    %v71 = vld [vmem:[#allocation5 + $0xf0] sm:$0xff]
    %v72 = vld [vmem:[#allocation5 + $0xf8] sm:$0xff]
    %v73 = vld [vmem:[#allocation5 + $0x100] sm:$0xff]
    %v74 = vld [vmem:[#allocation5 + $0x108] sm:$0xff]
    %v75 = vld [vmem:[#allocation5 + $0x110] sm:$0xff]
    %v76 = vld [vmem:[#allocation5 + $0x118] sm:$0xff]
    %v77 = vld [vmem:[#allocation5 + $0x120] sm:$0xff]
    %v78 = vld [vmem:[#allocation5 + $0x128] sm:$0xff]
    %v79 = vld [vmem:[#allocation5 + $0x130] sm:$0xff]
    %v80 = vld [vmem:[#allocation5 + $0x138] sm:$0xff]
    %v81 = vld [vmem:[#allocation5 + $0x140] sm:$0xff]
    %v82 = vld [vmem:[#allocation5 + $0x148] sm:$0xff]
    %v83 = vld [vmem:[#allocation5 + $0x150] sm:$0xff]
    %v84 = vld [vmem:[#allocation5 + $0x158] sm:$0xff]
    %v85 = vld [vmem:[#allocation5 + $0x160] sm:$0xff]
    %v86 = vld [vmem:[#allocation5 + $0x168] sm:$0xff]
    %v87 = vld [vmem:[#allocation5 + $0x170] sm:$0xff]
    %v88 = vld [vmem:[#allocation5 + $0x178] sm:$0xff]
    %89 = vmatprep.subr.mxu0 0.0
    %90 = vmatpush1.msra.mxu0 %v41
    %91 = vmatprep.subr.mxu0 0.0
    %92 = vmatpush1.msra.mxu0 %v42
    %93 = vmatprep.subr.mxu0 0.0
    %94 = vmatpush1.msra.mxu0 %v43
    %95 = vmatprep.subr.mxu0 0.0
    %96 = vmatpush1.msra.mxu0 %v44
    %97 = vmatprep.subr.mxu0 0.0
    %98 = vmatpush1.msra.mxu0 %v45
    %99 = vmatprep.subr.mxu0 0.0
    %100 = vmatpush1.msra.mxu0 %v46
    %101 = vmatprep.subr.mxu0 0.0
    %102 = vmatpush1.msra.mxu0 %v47
    %103 = vmatprep.subr.mxu0 0.0
    %104 = vmatpush1.msra.mxu0 %v48
    %105 = vmatprep.subr.mxu0 0.0
    %106 = vmatpush1.msra.mxu0 %v49
    %107 = vmatprep.subr.mxu0 0.0
    %108 = vmatpush1.msra.mxu0 %v50
    %109 = vmatprep.subr.mxu0 0.0
    %110 = vmatpush1.msra.mxu0 %v51
    %111 = vmatprep.subr.mxu0 0.0
    %112 = vmatpush1.msra.mxu0 %v52
    %113 = vmatprep.subr.mxu0 0.0
    %114 = vmatpush1.msra.mxu0 %v53
    %115 = vmatprep.subr.mxu0 0.0
    %116 = vmatpush1.msra.mxu0 %v54
    %117 = vmatprep.subr.mxu0 0.0
    %118 = vmatpush1.msra.mxu0 %v55
    %119 = vmatprep.subr.mxu0 0.0
    %120 = vmatpush1.msra.mxu0 %v56
    %121 = vmatprep.subr.mxu0 0.0
    %122 = vmatpush1.msra.mxu0 %v57
    %123 = vmatprep.subr.mxu0 0.0
    %124 = vmatpush1.msra.mxu0 %v58
    %125 = vmatprep.subr.mxu0 0.0
    %126 = vmatpush1.msra.mxu0 %v59
    %127 = vmatprep.subr.mxu0 0.0
    %128 = vmatpush1.msra.mxu0 %v60
    %129 = vmatprep.subr.mxu0 0.0
    %130 = vmatpush1.msra.mxu0 %v61
    %131 = vmatprep.subr.mxu0 0.0
    %132 = vmatpush1.msra.mxu0 %v62
    %133 = vmatprep.subr.mxu0 0.0
    %134 = vmatpush1.msra.mxu0 %v63
    %135 = vmatprep.subr.mxu0 0.0
    %136 = vmatpush1.msra.mxu0 %v64
    %137 = vmatprep.subr.mxu0 0.0
    %138 = vmatpush1.msra.mxu0 %v65
    %139 = vmatprep.subr.mxu0 0.0
    %140 = vmatpush1.msra.mxu0 %v66
    %141 = vmatprep.subr.mxu0 0.0
    %142 = vmatpush1.msra.mxu0 %v67
    %143 = vmatprep.subr.mxu0 0.0
    %144 = vmatpush1.msra.mxu0 %v68
    %145 = vmatprep.subr.mxu0 0.0
    %146 = vmatpush1.msra.mxu0 %v69
    %147 = vmatprep.subr.mxu0 0.0
    %148 = vmatpush1.msra.mxu0 %v70
    %149 = vmatprep.subr.mxu0 0.0
    %150 = vmatpush1.msra.mxu0 %v71
    %151 = vmatprep.subr.mxu0 0.0
    %152 = vmatpush1.msra.mxu0 %v72
    %153 = vmatprep.mubr.f32.mxu0 %v39
    %154 = vmatmul.mubr.f32.gmra.mrb[0].mxu0 %v38
    %v155 = vpop.f32.mrb[0].mxu0
    %v156 = vadd.f32 0.0, %v155
    %v157 = vpop.f32.mrb[0].mxu0
    %158 = vdwg.mxu0
    %159 = vmatprep.subr.mxu0 0.0
    %160 = vmatpush1.msra.mxu0 %v73
    %161 = vmatprep.subr.mxu0 0.0
    %162 = vmatpush1.msra.mxu0 %v74
    %163 = vmatprep.subr.mxu0 0.0
    %164 = vmatpush1.msra.mxu0 %v75
    %165 = vmatprep.subr.mxu0 0.0
    %166 = vmatpush1.msra.mxu0 %v76
    %167 = vmatprep.subr.mxu0 0.0
    %168 = vmatpush1.msra.mxu0 %v77
    %169 = vmatprep.subr.mxu0 0.0
    %170 = vmatpush1.msra.mxu0 %v78
    %171 = vmatprep.subr.mxu0 0.0
    %172 = vmatpush1.msra.mxu0 %v79
    %173 = vmatprep.subr.mxu0 0.0
    %174 = vmatpush1.msra.mxu0 %v80
    %175 = vmatprep.subr.mxu0 0.0
    %176 = vmatpush1.msra.mxu0 %v81
    %177 = vmatprep.subr.mxu0 0.0
    %178 = vmatpush1.msra.mxu0 %v82
    %179 = vmatprep.subr.mxu0 0.0
    %180 = vmatpush1.msra.mxu0 %v83
    %181 = vmatprep.subr.mxu0 0.0
    %182 = vmatpush1.msra.mxu0 %v84
    %183 = vmatprep.subr.mxu0 0.0
    %184 = vmatpush1.msra.mxu0 %v85
    %185 = vmatprep.subr.mxu0 0.0
    %186 = vmatpush1.msra.mxu0 %v86
    %187 = vmatprep.subr.mxu0 0.0
    %188 = vmatpush1.msra.mxu0 %v87
    %189 = vmatprep.subr.mxu0 0.0
    %190 = vmatpush1.msra.mxu0 %v88
    %191 = vmatprep.subr.mxu0 0.0
    %192 = vmatpush1.msra.mxu0 0.0
    %193 = vmatprep.subr.mxu0 0.0
    %194 = vmatpush1.msra.mxu0 0.0
    %195 = vmatprep.subr.mxu0 0.0
    %196 = vmatpush1.msra.mxu0 0.0
    %197 = vmatprep.subr.mxu0 0.0
    %198 = vmatpush1.msra.mxu0 0.0
    %199 = vmatprep.subr.mxu0 0.0
    %200 = vmatpush1.msra.mxu0 0.0
    %201 = vmatprep.subr.mxu0 0.0
    %202 = vmatpush1.msra.mxu0 0.0
    %203 = vmatprep.subr.mxu0 0.0
    %204 = vmatpush1.msra.mxu0 0.0
    %205 = vmatprep.subr.mxu0 0.0
    %206 = vmatpush1.msra.mxu0 0.0
    %207 = vmatprep.subr.mxu0 0.0
    %208 = vmatpush1.msra.mxu0 0.0
    %209 = vmatprep.subr.mxu0 0.0
    %210 = vmatpush1.msra.mxu0 0.0
    %211 = vmatprep.subr.mxu0 0.0
    %212 = vmatpush1.msra.mxu0 0.0
    %213 = vmatprep.subr.mxu0 0.0
    %214 = vmatpush1.msra.mxu0 0.0
    %215 = vmatprep.subr.mxu0 0.0
    %216 = vmatpush1.msra.mxu0 0.0
    %217 = vmatprep.subr.mxu0 0.0
    %218 = vmatpush1.msra.mxu0 0.0
    %219 = vmatprep.subr.mxu0 0.0
    %220 = vmatpush1.msra.mxu0 0.0
    %221 = vmatprep.subr.mxu0 0.0
    %222 = vmatpush1.msra.mxu0 0.0
    %223 = vmatprep.mubr.f32.mxu0 0.0
    %224 = vmatmul.mubr.f32.gmra.mrb[0].mxu0 %v40
    %v225 = vpop.f32.mrb[0].mxu0
    %v226 = vadd.f32 %v156, %v225
    %v227 = vpop.f32.mrb[0].mxu0
    %228 = vdwg.mxu0
    %229 = vst [vmem:[#allocation7] sm:$0xff] %v226
    // Predicated region
    $region18: #{tpu_custom_call.1} parent=1 // pred_check
      _
    $region19: #{tpu_custom_call.1} parent=1 // pred_check_branch
      %231 = sbr.rel (0) target = $region21
    $region20: #{tpu_custom_call.1} parent=1 // pred_region
      %s233 = ssub.s32 128, 128
      %234 = vsyncadd [#allocation4], %s233
      %s236 = sshll.u32 [#allocation7], 4
      %s237 = int_to_ptr.vmem [resolvable:$true] %s236
      %239 = dma.vmem_to_hbm [thread:$0]  %s237, 128, %s2, [#allocation4]
    $region21: #{tpu_custom_call.1} parent=1 // pred_fallthru
      _
    // Predicated region
    $region22: #{tpu_custom_call.1} parent=1 // pred_check
      _
    $region23: #{tpu_custom_call.1} parent=1 // pred_check_branch
      %241 = sbr.rel (0) target = $region25
    $region24: #{tpu_custom_call.1} parent=1 // pred_region
      %242 = dma.done [#allocation4], 128
    $region25: #{tpu_custom_call.1} parent=1 // pred_fallthru
      _
    %243 = vsyncpa [#allocation3], 1
    %244 = vsyncpa [#allocation6], 1
    %245 = vsyncpa [#allocation4], 1

</llo_original>
